<compile_context>
chip_gen: v7x
topology: tpu7x:2x2x1
jax: 0.10.0
libtpu: 0.0.40
codegen_flags: <defaults>
</compile_context>

<pallas_src>
import functools

import jax
import jax.numpy as jnp
from jax.experimental import pallas as pl
from jax.experimental.pallas import tpu as pltpu

NEG_SLOPE = 0.01  # nn.LeakyReLU default


def sepconv_kernel(L, x_ref, w_ref, b_ref, o_ref):
    # x_ref : (C_in, TB*L)     TB batch elements, batch folded into the lane axis
    # w_ref : (O, 3*C_in)      fused depthwise*pointwise weight, tap-major (k*C_in + c)
    # b_ref : (O, 1)           fused bias  (bp + wp @ bd)
    # o_ref : (O, TB*(L//2))   pooled output slab (single lane-dense store)
    x = x_ref[...]
    C_in, TL = x.shape
    TB = TL // L

    # Shifted copies for Conv1d(kernel=3, padding=1):
    #   x_left[:, j] = x[:, j-1] (0 at segment starts), x_right[:, j] = x[:, j+1] (0 at ends)
    zcol = jnp.zeros((C_in, 1), x.dtype)
    x_left = jnp.concatenate([zcol, x[:, : TL - 1]], axis=1)
    x_right = jnp.concatenate([x[:, 1:], zcol], axis=1)

    # Zero the lanes that crossed a batch boundary (only needed when TB > 1).
    if TB > 1:
        lane = jax.lax.broadcasted_iota(jnp.int32, (C_in, TL), 1)
        left_ok = lane != L
        for b in range(2, TB):
            left_ok = left_ok & (lane != b * L)
        x_left = jnp.where(left_ok, x_left, 0.0)
        right_ok = lane != (L - 1)
        for b in range(1, TB - 1):
            right_ok = right_ok & (lane != b * L + (L - 1))
        x_right = jnp.where(right_ok, x_right, 0.0)

    # Fused depthwise+pointwise conv: one (O, 3*C_in) @ (3*C_in, TL) matmul.
    taps = jnp.concatenate([x_left, x, x_right], axis=0)           # (3*C_in, TL)
    y = jnp.dot(w_ref[...], taps, preferred_element_type=jnp.float32)
    y = y + b_ref[...]                                             # (O, TL)

    # LeakyReLU
    y = jnp.where(y >= 0, y, NEG_SLOPE * y)

    # MaxPool1d(kernel=2, stride=2): even/odd lane gather via selection matmuls
    # (pairs never straddle a batch boundary because L is even), then one store.
    TP = TL // 2
    j = jax.lax.broadcasted_iota(jnp.int32, (TL, TP), 0)
    t = jax.lax.broadcasted_iota(jnp.int32, (TL, TP), 1)
    sel_even = (j == 2 * t).astype(jnp.float32)                    # (TL, TP)
    sel_odd = (j == 2 * t + 1).astype(jnp.float32)
    pooled = jnp.maximum(
        jnp.dot(y, sel_even, preferred_element_type=jnp.float32),
        jnp.dot(y, sel_odd, preferred_element_type=jnp.float32))   # (O, TP)
    o_ref[...] = pooled.astype(o_ref.dtype)


def separable_conv_block(x, wd, bd, wp, bp, *, batch_block=None):
    """Forward pass of SeparableConvBlock (nlayers=1).

    x : (B, C_in, L) float32
    wd: (C_in*M, 1, 3)  depthwise Conv1d weight (groups=C_in)
    bd: (C_in*M,)       depthwise bias
    wp: (O, C_in*M, 1)  pointwise Conv1d weight
    bp: (O,)            pointwise bias
    returns (B, O, L // 2)
    """
    B, C_in, L = x.shape
    CM = wd.shape[0]
    M = CM // C_in
    O = wp.shape[0]
    assert L % 2 == 0

    TB = B if batch_block is None else batch_block
    assert B % TB == 0
    # NOTE: if sub-blocking a large batch (TB < B), keep TB*L a multiple of 128
    # (or equal to B*L) so lane blocks stay aligned.

    # ---- parameter fusion (glue, plain JAX) --------------------------------
    wp_mat = wp[:, :, 0]                                     # (O, C_in*M)
    wd_mat = wd[:, 0, :]                                     # (C_in*M, 3)
    w_eff = jnp.einsum('ocm,cmk->ock',
                       wp_mat.reshape(O, C_in, M),
                       wd_mat.reshape(C_in, M, 3))           # (O, C_in, 3)
    w_flat = w_eff.transpose(0, 2, 1).reshape(O, 3 * C_in)   # index = k*C_in + c
    b_eff = (bp + wp_mat @ bd).reshape(O, 1)                 # fused bias

    # ---- lane-dense layout: fold batch into the lane (length) axis ---------
    x2 = x.transpose(1, 0, 2).reshape(C_in, B * L)           # (C_in, B*L)

    out2 = pl.pallas_call(
        functools.partial(sepconv_kernel, L),
        out_shape=jax.ShapeDtypeStruct((O, B * (L // 2)), x.dtype),
        grid_spec=pltpu.PrefetchScalarGridSpec(
            num_scalar_prefetch=0,
            grid=(B // TB,),
            in_specs=[
                pl.BlockSpec((C_in, TB * L), lambda i: (0, i)),
                pl.BlockSpec((O, 3 * C_in), lambda i: (0, 0)),
                pl.BlockSpec((O, 1), lambda i: (0, 0)),
            ],
            out_specs=pl.BlockSpec((O, TB * (L // 2)), lambda i: (0, i)),
        ),
        compiler_params=pltpu.CompilerParams(
            dimension_semantics=("parallel",)),
    )(x2, w_flat, b_eff)

    return out2.reshape(O, B, L // 2).transpose(1, 0, 2)     # (B, O, L//2)


def reference(x, wd, bd, wp, bp):
    """Pure-JAX reference matching PyTorch semantics (for validation)."""
    B, C_in, L = x.shape
    CM = wd.shape[0]
    M = CM // C_in
    O = wp.shape[0]
    xp = jnp.pad(x, ((0, 0), (0, 0), (1, 1)))
    w = wd.reshape(C_in, M, 3)
    taps = jnp.stack([xp[:, :, k:k + L] for k in range(3)], axis=-1)   # (B, C_in, L, 3)
    dw = jnp.einsum('bclk,cmk->bcml', taps, w) + bd.reshape(1, C_in, M, 1)
    dw = dw.reshape(B, CM, L)
    pw = jnp.einsum('oj,bjl->bol', wp[:, :, 0], dw) + bp[None, :, None]
    y = jnp.where(pw >= 0, pw, NEG_SLOPE * pw)
    return y.reshape(B, O, L // 2, 2).max(axis=-1)


if __name__ == "__main__":
    B, C_in, L, M, O = 2, 4, 16, 5, 5   # d_in=[4,16], out_channels=5 (depth multiplier = 5)
    key = jax.random.PRNGKey(0)
    k1, k2, k3, k4, k5 = jax.random.split(key, 5)

    x = jax.random.normal(k1, (B, C_in, L), jnp.float32)
    wd = jax.random.normal(k2, (C_in * M, 1, 3), jnp.float32) * 0.3
    bd = jax.random.normal(k3, (C_in * M,), jnp.float32) * 0.1
    wp = jax.random.normal(k4, (O, C_in * M, 1), jnp.float32) * 0.3
    bp = jax.random.normal(k5, (O,), jnp.float32) * 0.1

    out = separable_conv_block(x, wd, bd, wp, bp)
    out = jax.block_until_ready(out)

    ref = reference(x, wd, bd, wp, bp)
    assert out.shape == (B, O, L // 2), out.shape
    assert jnp.allclose(out, ref, rtol=1e-4, atol=1e-4), (
        float(jnp.max(jnp.abs(out - ref))))

    print("KERNEL_OK")
</pallas_src>

<mosaic_0001>
module attributes {stable_mosaic.version = 11 : i64} {
  func.func @sepconv_kernel(%arg0: i32, %arg1: memref<4x32xf32, #tpu.memory_space<vmem>>, %arg2: memref<5x12xf32, #tpu.memory_space<vmem>>, %arg3: memref<5x1xf32, #tpu.memory_space<vmem>>, %arg4: memref<5x16xf32, #tpu.memory_space<vmem>>) attributes {dimension_semantics = [#tpu.dimension_semantics<parallel>], iteration_bounds = array<i64: 1>, scalar_prefetch = 0 : i64, scratch_operands = 0 : i64, tpu.core_type = #tpu.core_type<tc>, window_params = [{transform_indices = @transform_0, window_bounds = array<i64: 4, 32>}, {pipeline_mode = #tpu.pipeline_mode<synchronous>, transform_indices = @transform_1, window_bounds = array<i64: 5, 12>}, {pipeline_mode = #tpu.pipeline_mode<synchronous>, transform_indices = @transform_2, window_bounds = array<i64: 5, 1>}, {transform_indices = @transform_3, window_bounds = array<i64: 5, 16>}]} {
    %c0 = arith.constant 0 : index
    %c0_0 = arith.constant 0 : index
    %0 = vector.load %arg1[%c0, %c0_0] : memref<4x32xf32, #tpu.memory_space<vmem>>, vector<4x32xf32>
    %cst = arith.constant 0.000000e+00 : f32
    %1 = vector.broadcast %cst : f32 to vector<4x1xf32>
    %2 = vector.extract_strided_slice %0 {offsets = [0, 0], sizes = [4, 31], strides = [1, 1]} : vector<4x32xf32> to vector<4x31xf32>
    %3 = tpu.concatenate %1, %2 in 1 : vector<4x1xf32>, vector<4x31xf32> -> vector<4x32xf32>
    %4 = vector.extract_strided_slice %0 {offsets = [0, 1], sizes = [4, 31], strides = [1, 1]} : vector<4x32xf32> to vector<4x31xf32>
    %5 = tpu.concatenate %4, %1 in 1 : vector<4x31xf32>, vector<4x1xf32> -> vector<4x32xf32>
    %6 = tpu.iota {dimensions = array<i32: 1>} : vector<4x32xi32>
    %c16_i32 = arith.constant 16 : i32
    %7 = vector.broadcast %c16_i32 : i32 to vector<4x32xi32>
    %8 = arith.cmpi ne, %6, %7 : vector<4x32xi32>
    %cst_1 = arith.constant 0.000000e+00 : f32
    %9 = vector.broadcast %cst_1 : f32 to vector<4x32xf32>
    %10 = arith.select %8, %3, %9 : vector<4x32xi1>, vector<4x32xf32>
    %c15_i32 = arith.constant 15 : i32
    %11 = vector.broadcast %c15_i32 : i32 to vector<4x32xi32>
    %12 = arith.cmpi ne, %6, %11 : vector<4x32xi32>
    %cst_2 = arith.constant 0.000000e+00 : f32
    %13 = vector.broadcast %cst_2 : f32 to vector<4x32xf32>
    %14 = arith.select %12, %5, %13 : vector<4x32xi1>, vector<4x32xf32>
    %15 = tpu.concatenate %10, %0, %14 in 0 : vector<4x32xf32>, vector<4x32xf32>, vector<4x32xf32> -> vector<12x32xf32>
    %c0_3 = arith.constant 0 : index
    %c0_4 = arith.constant 0 : index
    %16 = vector.load %arg2[%c0_3, %c0_4] : memref<5x12xf32, #tpu.memory_space<vmem>>, vector<5x12xf32>
    %cst_5 = arith.constant dense<0.000000e+00> : vector<5x32xf32>
    %17 = tpu.matmul %16, %15, %cst_5 {dimension_numbers = #tpu.dot_dimension_numbers<[1], [0], [0], [1], [0, 0, 1, 1], [], []>} : vector<5x12xf32>, vector<12x32xf32>, vector<5x32xf32> -> vector<5x32xf32>
    %c0_6 = arith.constant 0 : index
    %c0_7 = arith.constant 0 : index
    %18 = vector.load %arg3[%c0_6, %c0_7] : memref<5x1xf32, #tpu.memory_space<vmem>>, vector<5x1xf32>
    %19 = vector.broadcast %18 : vector<5x1xf32> to vector<5x32xf32>
    %20 = arith.addf %17, %19 : vector<5x32xf32>
    %cst_8 = arith.constant 0.000000e+00 : f32
    %21 = vector.broadcast %cst_8 : f32 to vector<5x32xf32>
    %22 = arith.cmpf oge, %20, %21 : vector<5x32xf32>
    %cst_9 = arith.constant 0.00999999977 : f32
    %23 = vector.broadcast %cst_9 : f32 to vector<5x32xf32>
    %24 = arith.mulf %23, %20 : vector<5x32xf32>
    %25 = arith.select %22, %20, %24 : vector<5x32xi1>, vector<5x32xf32>
    %26 = tpu.iota {dimensions = array<i32: 0>} : vector<32x16xi32>
    %27 = tpu.iota {dimensions = array<i32: 1>} : vector<32x16xi32>
    %c2_i32 = arith.constant 2 : i32
    %28 = vector.broadcast %c2_i32 : i32 to vector<32x16xi32>
    %29 = arith.muli %28, %27 : vector<32x16xi32>
    %30 = arith.cmpi eq, %26, %29 : vector<32x16xi32>
    %31 = arith.extui %30 : vector<32x16xi1> to vector<32x16xi32>
    %32 = arith.sitofp %31 : vector<32x16xi32> to vector<32x16xf32>
    %c2_i32_10 = arith.constant 2 : i32
    %33 = vector.broadcast %c2_i32_10 : i32 to vector<32x16xi32>
    %34 = arith.muli %33, %27 : vector<32x16xi32>
    %c1_i32 = arith.constant 1 : i32
    %35 = vector.broadcast %c1_i32 : i32 to vector<32x16xi32>
    %36 = arith.addi %34, %35 : vector<32x16xi32>
    %37 = arith.cmpi eq, %26, %36 : vector<32x16xi32>
    %38 = arith.extui %37 : vector<32x16xi1> to vector<32x16xi32>
    %39 = arith.sitofp %38 : vector<32x16xi32> to vector<32x16xf32>
    %cst_11 = arith.constant dense<0.000000e+00> : vector<5x16xf32>
    %40 = tpu.matmul %25, %32, %cst_11 {dimension_numbers = #tpu.dot_dimension_numbers<[1], [0], [0], [1], [0, 0, 1, 1], [], []>} : vector<5x32xf32>, vector<32x16xf32>, vector<5x16xf32> -> vector<5x16xf32>
    %cst_12 = arith.constant dense<0.000000e+00> : vector<5x16xf32>
    %41 = tpu.matmul %25, %39, %cst_12 {dimension_numbers = #tpu.dot_dimension_numbers<[1], [0], [0], [1], [0, 0, 1, 1], [], []>} : vector<5x32xf32>, vector<32x16xf32>, vector<5x16xf32> -> vector<5x16xf32>
    %42 = arith.maximumf %40, %41 : vector<5x16xf32>
    %c0_13 = arith.constant 0 : index
    %c0_14 = arith.constant 0 : index
    %43 = vector.load %arg4[%c0_13, %c0_14] : memref<5x16xf32, #tpu.memory_space<vmem>>, vector<5x16xf32>
    tpu.vector_store %arg4[%c0_13, %c0_14], %42 {strides = array<i32>} : memref<5x16xf32, #tpu.memory_space<vmem>>, vector<5x16xf32>,
    return
  }
  func.func @transform_0(%arg0: i32) -> (i32, i32) {
    %c0_i32 = arith.constant 0 : i32
    %c0_i32_0 = arith.constant 0 : i32
    return %c0_i32, %arg0 : i32, i32
  }
  func.func @transform_1(%arg0: i32) -> (i32, i32) {
    %c0_i32 = arith.constant 0 : i32
    %c0_i32_0 = arith.constant 0 : i32
    %c0_i32_1 = arith.constant 0 : i32
    return %c0_i32, %c0_i32_0 : i32, i32
  }
  func.func @transform_2(%arg0: i32) -> (i32, i32) {
    %c0_i32 = arith.constant 0 : i32
    %c0_i32_0 = arith.constant 0 : i32
    %c0_i32_1 = arith.constant 0 : i32
    return %c0_i32, %c0_i32_0 : i32, i32
  }
  func.func @transform_3(%arg0: i32) -> (i32, i32) {
    %c0_i32 = arith.constant 0 : i32
    %c0_i32_0 = arith.constant 0 : i32
    return %c0_i32, %arg0 : i32, i32
  }
}

</mosaic_0001>

<llo_original>
// kernel: tpu_custom_call.1
$region0: #{tpu_custom_call.1}
  #allocation0 [shape = 'u32[]', space=smem, size = 0x4, offset = 0x4, fixed_abs, tag = 'smem constant byte address 0x4 - core index']
  #allocation1 [shape = 'u32[144,128]{1,0:T(1,128)}', space=vmem, size = 0x12000, scoped, tag = 'internal scratch']
  %s0 = inlined_call_operand.vmem [shape: f32[4,32], index: 0, kind: input, shape index: {}]
  %s1 = inlined_call_operand.vmem [shape: f32[5,12], index: 1, kind: input, shape index: {}]
  %s2 = inlined_call_operand.vmem [shape: f32[5,1], index: 2, kind: input, shape index: {}]
  %s3 = inlined_call_operand.hbm [shape: f32[5,16], index: 3, kind: output, shape index: {}]
  %s4 = sld [smem:[#allocation0]]
  $region22: #{tpu_custom_call.1} parent=0
    _
  %s6 = ssub.s32 1, %s4
  %s7 = scalar_select 0, %s6, %s4
  $region1: #{tpu_custom_call.1} parent=0
    #allocation2 [shape = 'u8[4096]{0}', space=vmem, size = 0x1000, scoped, tag = 'output window, operand 0, single buffered']
    #allocation3 [shape = 's32[1]{0}', space=sflag, size = 0x4, scoped, tag = 'scoped memory for tpu_custom_call.1']
    %8 = vsyncpa [#allocation3], 0
    // Predicated region
    $region2: #{tpu_custom_call.1} parent=1 // pred_check
      _
    $region3: #{tpu_custom_call.1} parent=1 // pred_check_branch
      %10 = sbr.rel (0) target = $region5
    $region4: #{tpu_custom_call.1} parent=1 // pred_region
      _
    $region5: #{tpu_custom_call.1} parent=1 // pred_fallthru
      _
    // Predicated region
    $region6: #{tpu_custom_call.1} parent=1 // pred_check
      _
    $region7: #{tpu_custom_call.1} parent=1 // pred_check_branch
      %12 = sbr.rel (0) target = $region9
    $region8: #{tpu_custom_call.1} parent=1 // pred_region
      _
    $region9: #{tpu_custom_call.1} parent=1 // pred_fallthru
      _
    // Predicated region
    $region10: #{tpu_custom_call.1} parent=1 // pred_check
      _
    $region11: #{tpu_custom_call.1} parent=1 // pred_check_branch
      %14 = sbr.rel (0) target = $region13
    $region12: #{tpu_custom_call.1} parent=1 // pred_region
      _
    $region13: #{tpu_custom_call.1} parent=1 // pred_fallthru
      _
    %v15 = vld [vmem:[%s0] sm:$0xf]
    %17 = vrot.lane.b32.xlu0 %v15, 1
    %v18 = vpop.permute.xlu0 %17
    %vm20 = vcmask 7168
    %v21 = vsel %vm20, 0.0, %v18
    %22 = vrot.lane.b32.xlu0 %v15, 127
    %v23 = vpop.permute.xlu0 %22
    %vm25 = vcmask 252928
    %v26 = vsel %vm25, %v23, 0.0
    %v27 = vlaneseq
    %v28 = vand.u32 %v27, 127
    %vm29 = vcmp.ne.s32.totalorder %v28, 16
    %v30 = vsel %vm29, %v21, 0.0
    %vm31 = vcmp.ne.s32.totalorder %v28, 15
    %v32 = vsel %vm31, %v26, 0.0
    %v33 = vrot.slane %v15, 4
    %vm35 = vcmask 1043456
    %v36 = vsel %vm35, %v30, %v33
    %v37 = vld [vmem:[%s1] sm:$0x1f]
    %v38 = vld [vmem:[%s2] sm:$0x1f]
    %40 = vset.pattern.permute.xlu0 0
    %41 = vperm.xlu0 %40, %v38
    %v42 = vpop.permute.xlu0 %41
    %vm44 = vcmask 97280
    %v46 = vsel %vm44, %v37, 0
    %v49 = vsel %vm35, %v32, 0
    %51 = vmatprep.subr.mxu0 0.0
    %52 = vmatpush1.msra.mxu0 %v36
    %53 = vmatprep.subr.mxu0 0.0
    %54 = vmatpush1.msra.mxu0 %v49
    %55 = vmatprep.subr.mxu0 0.0
    %56 = vmatpush1.msra.mxu0 0.0
    %57 = vmatprep.subr.mxu0 0.0
    %58 = vmatpush1.msra.mxu0 0.0
    %59 = vmatprep.subr.mxu0 0.0
    %60 = vmatpush1.msra.mxu0 0.0
    %61 = vmatprep.subr.mxu0 0.0
    %62 = vmatpush1.msra.mxu0 0.0
    %63 = vmatprep.subr.mxu0 0.0
    %64 = vmatpush1.msra.mxu0 0.0
    %65 = vmatprep.subr.mxu0 0.0
    %66 = vmatpush1.msra.mxu0 0.0
    %67 = vmatprep.subr.mxu0 0.0
    %68 = vmatpush1.msra.mxu0 0.0
    %69 = vmatprep.subr.mxu0 0.0
    %70 = vmatpush1.msra.mxu0 0.0
    %71 = vmatprep.subr.mxu0 0.0
    %72 = vmatpush1.msra.mxu0 0.0
    %73 = vmatprep.subr.mxu0 0.0
    %74 = vmatpush1.msra.mxu0 0.0
    %75 = vmatprep.subr.mxu0 0.0
    %76 = vmatpush1.msra.mxu0 0.0
    %77 = vmatprep.subr.mxu0 0.0
    %78 = vmatpush1.msra.mxu0 0.0
    %79 = vmatprep.subr.mxu0 0.0
    %80 = vmatpush1.msra.mxu0 0.0
    %81 = vmatprep.subr.mxu0 0.0
    %82 = vmatpush1.msra.mxu0 0.0
    %83 = vmatprep.subr.mxu0 0.0
    %84 = vmatpush1.msra.mxu0 0.0
    %85 = vmatprep.subr.mxu0 0.0
    %86 = vmatpush1.msra.mxu0 0.0
    %87 = vmatprep.subr.mxu0 0.0
    %88 = vmatpush1.msra.mxu0 0.0
    %89 = vmatprep.subr.mxu0 0.0
    %90 = vmatpush1.msra.mxu0 0.0
    %91 = vmatprep.subr.mxu0 0.0
    %92 = vmatpush1.msra.mxu0 0.0
    %93 = vmatprep.subr.mxu0 0.0
    %94 = vmatpush1.msra.mxu0 0.0
    %95 = vmatprep.subr.mxu0 0.0
    %96 = vmatpush1.msra.mxu0 0.0
    %97 = vmatprep.subr.mxu0 0.0
    %98 = vmatpush1.msra.mxu0 0.0
    %99 = vmatprep.subr.mxu0 0.0
    %100 = vmatpush1.msra.mxu0 0.0
    %101 = vmatprep.subr.mxu0 0.0
    %102 = vmatpush1.msra.mxu0 0.0
    %103 = vmatprep.subr.mxu0 0.0
    %104 = vmatpush1.msra.mxu0 0.0
    %105 = vmatprep.subr.mxu0 0.0
    %106 = vmatpush1.msra.mxu0 0.0
    %107 = vmatprep.subr.mxu0 0.0
    %108 = vmatpush1.msra.mxu0 0.0
    %109 = vmatprep.subr.mxu0 0.0
    %110 = vmatpush1.msra.mxu0 0.0
    %111 = vmatprep.subr.mxu0 0.0
    %112 = vmatpush1.msra.mxu0 0.0
    %113 = vmatprep.subr.mxu0 0.0
    %114 = vmatpush1.msra.mxu0 0.0
    %115 = vmatprep.mubr.f32.mxu0 0.0
    %116 = vmatmul.mubr.f32.gmra.mrb[0].mxu0 %v46
    %v117 = vpop.f32.mrb[0].mxu0
    %v118 = vadd.f32 %v42, %v117
    %v119 = vpop.f32.mrb[0].mxu0
    %120 = vdwg.mxu0
    %vm121 = vcmp.ge.f32.partialorder %v118, 0.0
    %v122 = vmul.f32 %v118, 0.01
    %v123 = vsel %vm121, %v118, %v122
    %v124 = vlaneseq
    %v125 = vshrl.u32 %v124, 7
    %v126 = vadd.s32 %v125, 8
    %v127 = vadd.s32 %v125, 16
    %v128 = vadd.s32 %v125, 24
    %v129 = vmul.u32 %v28, 2
    %vm130 = vcmp.eq.s32.totalorder %v125, %v129
    %vm131 = vcmp.eq.s32.totalorder %v126, %v129
    %vm132 = vcmp.eq.s32.totalorder %v127, %v129
    %vm133 = vcmp.eq.s32.totalorder %v128, %v129
    %v134 = vsel %vm130, 1, 0
    %v135 = vsel %vm131, 1, 0
    %v136 = vsel %vm132, 1, 0
    %v137 = vsel %vm133, 1, 0
    %v138 = vcvt.s32.f32 %v134
    %v139 = vcvt.s32.f32 %v135
    %v140 = vcvt.s32.f32 %v136
    %v141 = vcvt.s32.f32 %v137
    %v142 = vadd.s32 %v129, 1
    %vm143 = vcmp.eq.s32.totalorder %v125, %v142
    %vm144 = vcmp.eq.s32.totalorder %v126, %v142
    %vm145 = vcmp.eq.s32.totalorder %v127, %v142
    %vm146 = vcmp.eq.s32.totalorder %v128, %v142
    %v147 = vsel %vm143, 1, 0
    %v148 = vsel %vm144, 1, 0
    %v149 = vsel %vm145, 1, 0
    %v150 = vsel %vm146, 1, 0
    %v151 = vcvt.s32.f32 %v147
    %v152 = vcvt.s32.f32 %v148
    %v153 = vcvt.s32.f32 %v149
    %v154 = vcvt.s32.f32 %v150
    %vm155 = vcmask 261120
    %v157 = vsel %vm155, %v123, 0
    %159 = vmatprep.subr.mxu0 0.0
    %160 = vmatpush1.msra.mxu0 %v138
    %161 = vmatprep.subr.mxu0 0.0
    %162 = vmatpush1.msra.mxu0 %v139
    %163 = vmatprep.subr.mxu0 0.0
    %164 = vmatpush1.msra.mxu0 %v140
    %165 = vmatprep.subr.mxu0 0.0
    %166 = vmatpush1.msra.mxu0 %v141
    %167 = vmatprep.subr.mxu0 0.0
    %168 = vmatpush1.msra.mxu0 0.0
    %169 = vmatprep.subr.mxu0 0.0
    %170 = vmatpush1.msra.mxu0 0.0
    %171 = vmatprep.subr.mxu0 0.0
    %172 = vmatpush1.msra.mxu0 0.0
    %173 = vmatprep.subr.mxu0 0.0
    %174 = vmatpush1.msra.mxu0 0.0
    %175 = vmatprep.subr.mxu0 0.0
    %176 = vmatpush1.msra.mxu0 0.0
    %177 = vmatprep.subr.mxu0 0.0
    %178 = vmatpush1.msra.mxu0 0.0
    %179 = vmatprep.subr.mxu0 0.0
    %180 = vmatpush1.msra.mxu0 0.0
    %181 = vmatprep.subr.mxu0 0.0
    %182 = vmatpush1.msra.mxu0 0.0
    %183 = vmatprep.subr.mxu0 0.0
    %184 = vmatpush1.msra.mxu0 0.0
    %185 = vmatprep.subr.mxu0 0.0
    %186 = vmatpush1.msra.mxu0 0.0
    %187 = vmatprep.subr.mxu0 0.0
    %188 = vmatpush1.msra.mxu0 0.0
    %189 = vmatprep.subr.mxu0 0.0
    %190 = vmatpush1.msra.mxu0 0.0
    %191 = vmatprep.subr.mxu0 0.0
    %192 = vmatpush1.msra.mxu0 0.0
    %193 = vmatprep.subr.mxu0 0.0
    %194 = vmatpush1.msra.mxu0 0.0
    %195 = vmatprep.subr.mxu0 0.0
    %196 = vmatpush1.msra.mxu0 0.0
    %197 = vmatprep.subr.mxu0 0.0
    %198 = vmatpush1.msra.mxu0 0.0
    %199 = vmatprep.subr.mxu0 0.0
    %200 = vmatpush1.msra.mxu0 0.0
    %201 = vmatprep.subr.mxu0 0.0
    %202 = vmatpush1.msra.mxu0 0.0
    %203 = vmatprep.subr.mxu0 0.0
    %204 = vmatpush1.msra.mxu0 0.0
    %205 = vmatprep.subr.mxu0 0.0
    %206 = vmatpush1.msra.mxu0 0.0
    %207 = vmatprep.subr.mxu0 0.0
    %208 = vmatpush1.msra.mxu0 0.0
    %209 = vmatprep.subr.mxu0 0.0
    %210 = vmatpush1.msra.mxu0 0.0
    %211 = vmatprep.subr.mxu0 0.0
    %212 = vmatpush1.msra.mxu0 0.0
    %213 = vmatprep.subr.mxu0 0.0
    %214 = vmatpush1.msra.mxu0 0.0
    %215 = vmatprep.subr.mxu0 0.0
    %216 = vmatpush1.msra.mxu0 0.0
    %217 = vmatprep.subr.mxu0 0.0
    %218 = vmatpush1.msra.mxu0 0.0
    %219 = vmatprep.subr.mxu0 0.0
    %220 = vmatpush1.msra.mxu0 0.0
    %221 = vmatprep.subr.mxu0 0.0
    %222 = vmatpush1.msra.mxu0 0.0
    %223 = vmatprep.mubr.f32.mxu0 0.0
    %224 = vmatmul.mubr.f32.gmra.mrb[0].mxu0 %v157
    %v225 = vpop.f32.mrb[0].mxu0
    %v226 = vadd.f32 0.0, %v225
    %v227 = vpop.f32.mrb[0].mxu0
    %228 = vdwg.mxu0
    %229 = vmatprep.subr.mxu0 0.0
    %230 = vmatpush1.msra.mxu0 %v151
    %231 = vmatprep.subr.mxu0 0.0
    %232 = vmatpush1.msra.mxu0 %v152
    %233 = vmatprep.subr.mxu0 0.0
    %234 = vmatpush1.msra.mxu0 %v153
    %235 = vmatprep.subr.mxu0 0.0
    %236 = vmatpush1.msra.mxu0 %v154
    %237 = vmatprep.subr.mxu0 0.0
    %238 = vmatpush1.msra.mxu0 0.0
    %239 = vmatprep.subr.mxu0 0.0
    %240 = vmatpush1.msra.mxu0 0.0
    %241 = vmatprep.subr.mxu0 0.0
    %242 = vmatpush1.msra.mxu0 0.0
    %243 = vmatprep.subr.mxu0 0.0
    %244 = vmatpush1.msra.mxu0 0.0
    %245 = vmatprep.subr.mxu0 0.0
    %246 = vmatpush1.msra.mxu0 0.0
    %247 = vmatprep.subr.mxu0 0.0
    %248 = vmatpush1.msra.mxu0 0.0
    %249 = vmatprep.subr.mxu0 0.0
    %250 = vmatpush1.msra.mxu0 0.0
    %251 = vmatprep.subr.mxu0 0.0
    %252 = vmatpush1.msra.mxu0 0.0
    %253 = vmatprep.subr.mxu0 0.0
    %254 = vmatpush1.msra.mxu0 0.0
    %255 = vmatprep.subr.mxu0 0.0
    %256 = vmatpush1.msra.mxu0 0.0
    %257 = vmatprep.subr.mxu0 0.0
    %258 = vmatpush1.msra.mxu0 0.0
    %259 = vmatprep.subr.mxu0 0.0
    %260 = vmatpush1.msra.mxu0 0.0
    %261 = vmatprep.subr.mxu0 0.0
    %262 = vmatpush1.msra.mxu0 0.0
    %263 = vmatprep.subr.mxu0 0.0
    %264 = vmatpush1.msra.mxu0 0.0
    %265 = vmatprep.subr.mxu0 0.0
    %266 = vmatpush1.msra.mxu0 0.0
    %267 = vmatprep.subr.mxu0 0.0
    %268 = vmatpush1.msra.mxu0 0.0
    %269 = vmatprep.subr.mxu0 0.0
    %270 = vmatpush1.msra.mxu0 0.0
    %271 = vmatprep.subr.mxu0 0.0
    %272 = vmatpush1.msra.mxu0 0.0
    %273 = vmatprep.subr.mxu0 0.0
    %274 = vmatpush1.msra.mxu0 0.0
    %275 = vmatprep.subr.mxu0 0.0
    %276 = vmatpush1.msra.mxu0 0.0
    %277 = vmatprep.subr.mxu0 0.0
    %278 = vmatpush1.msra.mxu0 0.0
    %279 = vmatprep.subr.mxu0 0.0
    %280 = vmatpush1.msra.mxu0 0.0
    %281 = vmatprep.subr.mxu0 0.0
    %282 = vmatpush1.msra.mxu0 0.0
    %283 = vmatprep.subr.mxu0 0.0
    %284 = vmatpush1.msra.mxu0 0.0
    %285 = vmatprep.subr.mxu0 0.0
    %286 = vmatpush1.msra.mxu0 0.0
    %287 = vmatprep.subr.mxu0 0.0
    %288 = vmatpush1.msra.mxu0 0.0
    %289 = vmatprep.subr.mxu0 0.0
    %290 = vmatpush1.msra.mxu0 0.0
    %291 = vmatprep.subr.mxu0 0.0
    %292 = vmatpush1.msra.mxu0 0.0
    %293 = vmatprep.mubr.f32.mxu0 0.0
    %294 = vmatmul.mubr.f32.gmra.mrb[0].mxu0 %v157
    %v295 = vpop.f32.mrb[0].mxu0
    %v296 = vadd.f32 0.0, %v295
    %v297 = vpop.f32.mrb[0].mxu0
    %298 = vdwg.mxu0
    %v299 = vmax.f32 %v226, %v296
    %vm300 = vcmask 126976
    %301 = vst.msk [vmem:[#allocation2] sm:$0x1f] %vm300, %v299
    // Predicated region
    $region14: #{tpu_custom_call.1} parent=1 // pred_check
      _
    $region15: #{tpu_custom_call.1} parent=1 // pred_check_branch
      %303 = sbr.rel (0) target = $region17
    $region16: #{tpu_custom_call.1} parent=1 // pred_region
      %s305 = ssub.s32 128, 128
      %306 = vsyncadd [#allocation3], %s305
      %s308 = sshll.u32 [#allocation2], 4
      %s309 = int_to_ptr.vmem [resolvable:$true] %s308
      %311 = dma.vmem_to_hbm [thread:$0]  %s309, 128, %s3, [#allocation3]
    $region17: #{tpu_custom_call.1} parent=1 // pred_fallthru
      _
    // Predicated region
    $region18: #{tpu_custom_call.1} parent=1 // pred_check
      _
    $region19: #{tpu_custom_call.1} parent=1 // pred_check_branch
      %313 = sbr.rel (0) target = $region21
    $region20: #{tpu_custom_call.1} parent=1 // pred_region
      %314 = dma.done [#allocation3], 128
    $region21: #{tpu_custom_call.1} parent=1 // pred_fallthru
      _
    %315 = vsyncpa [#allocation3], 1

</llo_original>
